<compile_context>
chip_gen: v7x
topology: tpu7x:2x2x1
jax: 0.10.0
libtpu: 0.0.40
codegen_flags: <defaults>
</compile_context>

<pallas_src>
import functools
import numpy as np
import jax
import jax.numpy as jnp
from jax.experimental import pallas as pl
from jax.experimental.pallas import tpu as pltpu

_NPAD = 128  # lane-dense width of the fused final output


def _vmem_limit_bytes():
    """Generation-aware scoped-VMEM limit (conservative fallback if query fails)."""
    try:
        cap = int(pltpu.get_tpu_info().vmem_capacity_bytes)
    except Exception:
        cap = 64 * 1024 * 1024
    return int(min(100 * 2**20, max(32 * 2**20, cap - 16 * 2**20)))


def _row_tile(n_rows, row_bytes, max_block_bytes=8 * 1024 * 1024, max_tile=512):
    """Fixed large row tile (multiple of 8) with bounded block bytes.

    Grids use pl.cdiv so the last block may be ragged: out-of-range row stores
    are masked by Pallas and all per-row math tolerates garbage in padded rows
    (kernel 0 additionally masks padded rows before its column-sum accumulate)."""
    t = min(max_tile, max(8, ((max_block_bytes // max(row_bytes, 1)) // 8) * 8))
    return n_rows if t >= n_rows else t


# --------------------------- Pallas kernels ---------------------------------

def _base_flag_kernel(asy_ref, base_ref, colsum_ref, *, con_thr, n_rows, tile_rows):
    """Class-invariant precompute (hoisted out of the per-class loop).

    base_flag = (asy_iou_map > con_thr) * asy_iou_flag, stored as bf16 (exact for
    0/1 -> halves the resident bytes of the per-class kernel), plus its column
    sums accumulated across row tiles."""
    i = pl.program_id(0)
    asy = asy_ref[...]                                                  # (TR, R)
    over = (asy > con_thr).astype(jnp.float32)
    cnt = jnp.sum(over, axis=-1, keepdims=True)                         # (TR, 1)
    row_flag = (cnt < 0.9 * asy.shape[-1]).astype(jnp.float32)          # asy_iou_flag
    base = over * row_flag
    # Ragged last block: zero padded rows so the column-sum accumulator is exact.
    row_idx = i * tile_rows + jax.lax.broadcasted_iota(jnp.int32, base.shape, 0)
    base = jnp.where(row_idx < n_rows, base, 0.0)
    base_ref[...] = base.astype(jnp.bfloat16)

    @pl.when(i == 0)
    def _():
        colsum_ref[...] = jnp.zeros_like(colsum_ref)

    colsum_ref[...] += jnp.sum(base, axis=0, keepdims=True)             # (1, R)


def _seed_kernel(base_ref, colsum_ref, colmask_ref, det_ref, idx_ref):
    """Per-class seed argmax, batched over classes via grid=(K,) ("parallel").

    The colmask multiply and per-class column reduction are hoisted out of the
    argmax path: argmax at masked-out columns is discarded on host, and column
    validity only needs the precomputed column sums.  Validity is folded into
    the single int32 output as idx = -1 (one output, one D2H transfer)."""
    res_det = base_ref[...].astype(jnp.float32) * det_ref[...]          # (R,R)*(R,1)
    col_max = jnp.max(res_det, axis=0, keepdims=True)                   # (1, R)
    r = res_det.shape[0]
    row_iota = jax.lax.broadcasted_iota(jnp.int32, res_det.shape, 0)
    # first-max (min index) tie break, matching torch.argmax's documented behavior
    arg = jnp.min(jnp.where(res_det == col_max, row_iota, r),
                  axis=0, keepdims=True)                                # (1, R) int32
    valid = (colsum_ref[...] > 0.0) & (colmask_ref[...] > 0.0)          # (1, R)
    idx_ref[...] = jnp.where(valid, arg, -1).astype(jnp.int32)


def _final_kernel(iou_ref, colmask_ref, lab_ref, out_ref, *, cls_thr, iou_thr, num_cls):
    """Masked max/argmax over gt columns + fused one-hot MXU gather.

    lab_ref packs per-proposal [gt_labels (C+1) | gt_weights | 0-pad] into 128
    lanes, so pseudo labels AND loss weights fall out of a single (TM,R)x(R,128)
    matmul; the thresholded iou label is written into lane C+2 of the same
    lane-dense output block (no masked width-1 stores anywhere).  Ragged last
    row tiles are fine: all math is per-row and padded-row stores are masked."""
    iou = iou_ref[...]                                                  # (TM, R)
    r = iou.shape[-1]
    masked = jnp.where(colmask_ref[...] > 0.0, iou, -1.0)
    max_v = jnp.max(masked, axis=-1, keepdims=True)                     # (TM, 1)
    col_iota = jax.lax.broadcasted_iota(jnp.int32, masked.shape, 1)
    idx = jnp.min(jnp.where(masked == max_v, col_iota, r),
                  axis=-1, keepdims=True)                               # (TM, 1)
    onehot = (col_iota == idx).astype(jnp.float32)                      # (TM, R)
    # f32 MXU pass: exact for 0/1 labels and keeps the packed gt_weights lane at
    # full precision; kernel 2 is DMA-bound on the iou read, so the bf16-split
    # suggested for v5e would not move wall clock here.
    gathered = jnp.dot(onehot, lab_ref[...],
                       preferred_element_type=jnp.float32)              # (TM, 128)

    lane = jax.lax.broadcasted_iota(jnp.int32, gathered.shape, 1)
    ignore = max_v == 0.0
    bg = (max_v < cls_thr) & jnp.logical_not(ignore)
    out = jnp.where(ignore, 0.0, gathered)          # zero labels + loss weight
    is_label_col = lane <= num_cls                  # lanes 0..C
    out = jnp.where(bg & is_label_col, (lane == 0).astype(jnp.float32), out)
    piou = (max_v > iou_thr).astype(jnp.float32)
    out = jnp.where(lane == num_cls + 2, piou, out)
    # NOTE: the reference's big-proposal masking (`pseudo_labels[~asy_iou_flag,:]=0`)
    # raises IndexError inside try/except and is silently skipped, so it is
    # intentionally a no-op here as well.
    out_ref[...] = out


# ------------------------------ wrapper --------------------------------------

class CIMLayerPallas:
    """JAX/Pallas port of CIM_layer (forward, using_CIM=True path)."""

    def __init__(self, p_seed=0.1, cls_thr=0.25, iou_thr=0.5, con_thr=0.85,
                 Anti_noise_sampling=True):
        self.p_seed = p_seed
        self.cls_thr = cls_thr
        self.nms_thr = cls_thr
        self.iou_thr = iou_thr
        self.con_thr = con_thr
        self.Anti_noise_sampling = Anti_noise_sampling

    @staticmethod
    def _greedy_nms(iou, thr):
        # TODO(synk): greedy instance-NMS is inherently sequential / data-dependent
        # (dynamic list shrinking) -> host glue, exactly mirrors instance_nms.
        alive = list(range(iou.shape[0]))
        keep = []
        while alive:
            i = alive.pop(0)
            keep.append(i)
            alive = [j for j in alive if iou[i, j] < thr]
        return np.asarray(keep, dtype=np.int64)

    def __call__(self, predict_cls, predict_det, rois, labels,
                 iou_map, asy_iou_map, using_CIM=True):
        # TODO(synk): MIST_label path (using_CIM=False) not implemented.
        assert using_CIM

        if rois.ndim == 3:
            rois = rois[0]
        rois = rois[:, 1:]  # kept for fidelity; unused since iou_map is provided

        label_np = np.asarray(labels, dtype=np.float32).reshape(-1)
        C = label_np.shape[-1]
        assert C in (20, 80)
        R = predict_cls.shape[0]

        cls_dev = predict_cls[:, 1:] if predict_cls.shape[-1] - 1 == C else predict_cls
        det_dev = predict_det[:, 1:] if predict_det.shape[-1] - 1 == C else predict_det
        cls_np = np.asarray(cls_dev, dtype=np.float32)
        det_np = np.asarray(det_dev, dtype=np.float32)
        preds_np = cls_np * det_np   # only ever consumed on host -> no device kernel
        iou_map = jnp.asarray(iou_map, jnp.float32)
        asy_iou_map = jnp.asarray(asy_iou_map, jnp.float32)
        iou_np = np.asarray(iou_map)

        vmem_limit = _vmem_limit_bytes()
        keep_count = int(np.ceil(self.p_seed * R))
        klasses = [int(c) for c in np.nonzero(label_np)[0]]
        K = len(klasses)
        gt_labels = np.zeros((R, C + 1), np.float32)
        gt_weights = -np.ones((R,), np.float32)

        if K > 0:
            # ---- host: per-class top-k sort + greedy instance NMS (seed columns) --
            col_masks = np.zeros((K, 1, R), np.float32)
            det_stack = np.zeros((K, R, 1), np.float32)
            for ki, c in enumerate(klasses):
                cls_prob = cls_np[:, c]
                if det_np.shape[1] == C:
                    det_stack[ki, :, 0] = det_np[:, c]
                elif det_np.shape[1] == 1:
                    det_stack[ki, :, 0] = det_np[:, 0]
                else:
                    raise NotImplementedError(
                        'Detector only supports class-specific and class-agnostic methods')
                keep_sort_idx = np.argsort(-cls_prob)[:keep_count]
                temp_iou = iou_np[np.ix_(keep_sort_idx, keep_sort_idx)]
                keep_nms_idx = keep_sort_idx[self._greedy_nms(temp_iou, self.nms_thr)]
                col_masks[ki, 0, keep_nms_idx] = 1.0

            # ---- Pallas kernel 0: class-invariant base_flag + column sums --------
            TR = _row_tile(R, row_bytes=R * 4)
            base_flag, col_sum = pl.pallas_call(
                functools.partial(_base_flag_kernel, con_thr=self.con_thr,
                                  n_rows=R, tile_rows=TR),
                out_shape=(jax.ShapeDtypeStruct((R, R), jnp.bfloat16),
                           jax.ShapeDtypeStruct((1, R), jnp.float32)),
                grid=(pl.cdiv(R, TR),),
                in_specs=[pl.BlockSpec((TR, R), lambda i: (i, 0))],
                out_specs=(pl.BlockSpec((TR, R), lambda i: (i, 0)),
                           pl.BlockSpec((1, R), lambda i: (0, 0))),   # accumulator
                compiler_params=pltpu.CompilerParams(
                    dimension_semantics=("arbitrary",),
                    vmem_limit_bytes=vmem_limit),
            )(asy_iou_map)

            # ---- Pallas kernel 1: per-class seed argmax, batched over classes -----
            # TODO(synk): for very large R (>~4k) base_flag residency plus Mosaic's
            # (R,R) f32 intermediates would need a row-reduction grid axis that
            # streams base_flag tiles and carries running max/argmin; whole-matrix
            # residency is comfortable for typical proposal counts.
            res_idx_dev = pl.pallas_call(
                _seed_kernel,
                out_shape=jax.ShapeDtypeStruct((K, 1, R), jnp.int32),
                grid=(K,),
                in_specs=[pl.BlockSpec((R, R), lambda c: (0, 0)),      # resident bf16
                          pl.BlockSpec((1, R), lambda c: (0, 0)),      # resident
                          pl.BlockSpec((None, 1, R), lambda c: (c, 0, 0)),
                          pl.BlockSpec((None, R, 1), lambda c: (c, 0, 0))],
                out_specs=pl.BlockSpec((None, 1, R), lambda c: (c, 0, 0)),
                compiler_params=pltpu.CompilerParams(
                    dimension_semantics=("parallel",),   # classes shard across v7x TCs
                    vmem_limit_bytes=vmem_limit),
            )(base_flag, col_sum, jnp.asarray(col_masks), jnp.asarray(det_stack))

            # single host<->device sync for the entire class loop
            res_idx_all = np.asarray(res_idx_dev)[:, 0, :]             # (K, R)

            # ---- host: sequential greedy gt assignment (order-dependent) ----------
            for ki, c in enumerate(klasses):
                row_idx = res_idx_all[ki]
                res_sel = np.unique(row_idx[row_idx >= 0])   # valid columns only
                if res_sel.size == 0:            # == reference's `if flag.sum() != 0`
                    continue
                preds_tmp = preds_np[:, c]
                is_higher = preds_tmp[res_sel] > gt_weights[res_sel]
                if is_higher.sum() > 0:
                    keep_idxs = res_sel[is_higher]
                    gt_labels[keep_idxs, :] = 0.0
                    gt_labels[keep_idxs, c + 1] = 1.0
                    gt_weights[keep_idxs] = preds_tmp[keep_idxs]

        gt_mask = gt_labels.sum(-1) > 0
        if gt_mask.sum() == 0:
            return None, None, None

        # ---- Anti-noise sampling (reference uses global np.random) ----------------
        # TODO(synk): np.random.choice over data-dependent index sets has no clean
        # static-shape Pallas equivalent -> host glue, deterministic via fixed seed.
        inds = np.ones((R,), bool)
        if self.Anti_noise_sampling:
            rng = np.random.RandomState(0)
            for c in klasses:
                class_idx = np.nonzero(gt_mask & (gt_labels[:, c + 1] == 1))[0]
                if len(class_idx) == 0:
                    continue
                prob = gt_weights[class_idx]
                if prob.sum() <= 0:
                    continue
                sampled = rng.choice(class_idx, size=len(class_idx), replace=True,
                                     p=prob / prob.sum())
                sampled = np.unique(sampled)
                inds[class_idx] = False
                inds[sampled] = True

        gt_col_mask = (gt_mask & inds).astype(np.float32)[None, :]         # (1, R)
        # pack [gt_labels | gt_weights | 0-pad] lane-dense so one MXU pass gathers both
        lab_ext = np.zeros((R, _NPAD), np.float32)
        lab_ext[:, :C + 1] = gt_labels
        lab_ext[:, C + 1] = gt_weights

        # ---- Pallas kernel 2: masked max/argmax + fused one-hot gather ------------
        TM = _row_tile(R, row_bytes=R * 4)
        out_pad = pl.pallas_call(
            functools.partial(_final_kernel, cls_thr=self.cls_thr,
                              iou_thr=self.iou_thr, num_cls=C),
            out_shape=jax.ShapeDtypeStruct((R, _NPAD), jnp.float32),
            grid=(pl.cdiv(R, TM),),                 # ragged last block is masked
            in_specs=[pl.BlockSpec((TM, R), lambda i: (i, 0)),
                      pl.BlockSpec((1, R), lambda i: (0, 0)),          # resident
                      pl.BlockSpec((R, _NPAD), lambda i: (0, 0))],     # resident
            out_specs=pl.BlockSpec((TM, _NPAD), lambda i: (i, 0)),
            compiler_params=pltpu.CompilerParams(
                dimension_semantics=("parallel",),   # rows shard across v7x's 2 TCs
                vmem_limit_bytes=vmem_limit),
        )(iou_map, jnp.asarray(gt_col_mask), jnp.asarray(lab_ext))

        pseudo_labels = out_pad[:, :C + 1]
        loss_weights = out_pad[:, C + 1]
        pseudo_iou_labels = out_pad[:, C + 2]
        return pseudo_labels, pseudo_iou_labels, loss_weights


# ------------------------------ demo glue -------------------------------------

def pairwise_iou(boxes):
    """boxes: (R, 4) [x1, y1, x2, y2] -> (iou_map, asy_iou_map)."""
    x1, y1, x2, y2 = boxes[:, 0], boxes[:, 1], boxes[:, 2], boxes[:, 3]
    area = (x2 - x1) * (y2 - y1)
    ix1 = jnp.maximum(x1[:, None], x1[None, :])
    iy1 = jnp.maximum(y1[:, None], y1[None, :])
    ix2 = jnp.minimum(x2[:, None], x2[None, :])
    iy2 = jnp.minimum(y2[:, None], y2[None, :])
    iw = jnp.clip(ix2 - ix1, 0.0)
    ih = jnp.clip(iy2 - iy1, 0.0)
    inter = iw * ih
    union = area[:, None] + area[None, :] - inter
    iou = inter / jnp.maximum(union, 1e-6)
    asy = inter / jnp.maximum(area[:, None], 1e-6)
    return iou.astype(jnp.float32), asy.astype(jnp.float32)


if __name__ == "__main__":
    key = jax.random.PRNGKey(0)
    R, C = 128, 20
    k1, k2, k3, k4 = jax.random.split(key, 4)

    predict_cls = jax.nn.softmax(jax.random.normal(k1, (R, C + 1)), axis=-1)
    predict_det = jax.nn.sigmoid(jax.random.normal(k2, (R, C + 1)))

    xy = jax.random.uniform(k3, (R, 2), minval=0.0, maxval=80.0)
    wh = jax.random.uniform(k4, (R, 2), minval=10.0, maxval=48.0)
    boxes = jnp.concatenate([xy, xy + wh], axis=-1)
    rois = jnp.concatenate([jnp.zeros((R, 1)), boxes], axis=-1)[None]   # (1, R, 5)

    iou_map, asy_iou_map = pairwise_iou(boxes)
    labels = jnp.zeros((C,), jnp.float32).at[jnp.array([2, 7, 11])].set(1.0)

    layer = CIMLayerPallas()
    pseudo_labels, pseudo_iou_labels, loss_weights = layer(
        predict_cls, predict_det, rois, labels, iou_map, asy_iou_map)

    jax.block_until_ready((pseudo_labels, pseudo_iou_labels, loss_weights))
    assert pseudo_labels.shape == (R, C + 1)
    assert pseudo_iou_labels.shape == (R,)
    assert loss_weights.shape == (R,)
    print("KERNEL_OK")
</pallas_src>

<mosaic_0001>
module attributes {stable_mosaic.version = 11 : i64} {
  func.func @_base_flag_kernel(%arg0: i32, %arg1: memref<128x128xf32, #tpu.memory_space<vmem>>, %arg2: memref<128x128xbf16, #tpu.memory_space<vmem>>, %arg3: memref<1x128xf32, #tpu.memory_space<vmem>>) attributes {dimension_semantics = [#tpu.dimension_semantics<arbitrary>], iteration_bounds = array<i64: 1>, scalar_prefetch = 0 : i64, scratch_operands = 0 : i64, tpu.core_type = #tpu.core_type<tc>, window_params = [{transform_indices = @transform_0, window_bounds = array<i64: 128, 128>}, {transform_indices = @transform_1, window_bounds = array<i64: 128, 128>}, {pipeline_mode = #tpu.pipeline_mode<synchronous>, transform_indices = @transform_2, window_bounds = array<i64: 1, 128>}]} {
    %c0 = arith.constant 0 : index
    %c0_0 = arith.constant 0 : index
    %0 = vector.load %arg1[%c0, %c0_0] : memref<128x128xf32, #tpu.memory_space<vmem>>, vector<128x128xf32>
    %cst = arith.constant 8.500000e-01 : f32
    %1 = vector.broadcast %cst : f32 to vector<128x128xf32>
    %2 = arith.cmpf ogt, %0, %1 : vector<128x128xf32>
    %3 = arith.extui %2 : vector<128x128xi1> to vector<128x128xi32>
    %4 = arith.sitofp %3 : vector<128x128xi32> to vector<128x128xf32>
    %cst_1 = arith.constant dense<0.000000e+00> : vector<128xf32>
    %5 = vector.multi_reduction <add>, %4, %cst_1 [1] : vector<128x128xf32> to vector<128xf32>
    %6 = vector.shape_cast %5 : vector<128xf32> to vector<128x1xf32>
    %cst_2 = arith.constant 1.152000e+02 : f32
    %7 = vector.broadcast %cst_2 : f32 to vector<128x1xf32>
    %8 = arith.cmpf olt, %6, %7 : vector<128x1xf32>
    %9 = arith.extui %8 : vector<128x1xi1> to vector<128x1xi32>
    %10 = arith.sitofp %9 : vector<128x1xi32> to vector<128x1xf32>
    %11 = vector.broadcast %10 : vector<128x1xf32> to vector<128x128xf32>
    %12 = arith.mulf %4, %11 : vector<128x128xf32>
    %c128_i32 = arith.constant 128 : i32
    %13 = arith.muli %arg0, %c128_i32 : i32
    %14 = tpu.iota {dimensions = array<i32: 0>} : vector<128x128xi32>
    %15 = vector.broadcast %13 : i32 to vector<128x128xi32>
    %16 = arith.addi %15, %14 : vector<128x128xi32>
    %c128_i32_3 = arith.constant 128 : i32
    %17 = vector.broadcast %c128_i32_3 : i32 to vector<128x128xi32>
    %18 = arith.cmpi slt, %16, %17 : vector<128x128xi32>
    %cst_4 = arith.constant 0.000000e+00 : f32
    %19 = vector.broadcast %cst_4 : f32 to vector<128x128xf32>
    %20 = arith.select %18, %12, %19 : vector<128x128xi1>, vector<128x128xf32>
    %21 = arith.truncf %20 : vector<128x128xf32> to vector<128x128xbf16>
    %c0_5 = arith.constant 0 : index
    %c0_6 = arith.constant 0 : index
    %22 = vector.load %arg2[%c0_5, %c0_6] : memref<128x128xbf16, #tpu.memory_space<vmem>>, vector<128x128xbf16>
    tpu.vector_store %arg2[%c0_5, %c0_6], %21 {strides = array<i32>} : memref<128x128xbf16, #tpu.memory_space<vmem>>, vector<128x128xbf16>,
    %c0_i32 = arith.constant 0 : i32
    %23 = arith.cmpi eq, %arg0, %c0_i32 : i32
    %24 = arith.extui %23 : i1 to i32
    %c0_i32_7 = arith.constant 0 : i32
    %25 = arith.cmpi ne, %24, %c0_i32_7 : i32
    scf.if %25 {
      %cst_13 = arith.constant 0.000000e+00 : f32
      %31 = vector.broadcast %cst_13 : f32 to vector<1x128xf32>
      %c0_14 = arith.constant 0 : index
      %c0_15 = arith.constant 0 : index
      %32 = vector.load %arg3[%c0_14, %c0_15] : memref<1x128xf32, #tpu.memory_space<vmem>>, vector<1x128xf32>
      tpu.vector_store %arg3[%c0_14, %c0_15], %31 {strides = array<i32>} : memref<1x128xf32, #tpu.memory_space<vmem>>, vector<1x128xf32>,
    } else {
    }
    %c0_8 = arith.constant 0 : index
    %c0_9 = arith.constant 0 : index
    %26 = vector.load %arg3[%c0_8, %c0_9] : memref<1x128xf32, #tpu.memory_space<vmem>>, vector<1x128xf32>
    %cst_10 = arith.constant dense<0.000000e+00> : vector<128xf32>
    %27 = vector.multi_reduction <add>, %20, %cst_10 [0] : vector<128x128xf32> to vector<128xf32>
    %28 = vector.shape_cast %27 : vector<128xf32> to vector<1x128xf32>
    %29 = arith.addf %26, %28 : vector<1x128xf32>
    %c0_11 = arith.constant 0 : index
    %c0_12 = arith.constant 0 : index
    %30 = vector.load %arg3[%c0_11, %c0_12] : memref<1x128xf32, #tpu.memory_space<vmem>>, vector<1x128xf32>
    tpu.vector_store %arg3[%c0_11, %c0_12], %29 {strides = array<i32>} : memref<1x128xf32, #tpu.memory_space<vmem>>, vector<1x128xf32>,
    return
  }
  func.func @transform_0(%arg0: i32) -> (i32, i32) {
    %c0_i32 = arith.constant 0 : i32
    %c0_i32_0 = arith.constant 0 : i32
    return %arg0, %c0_i32 : i32, i32
  }
  func.func @transform_1(%arg0: i32) -> (i32, i32) {
    %c0_i32 = arith.constant 0 : i32
    %c0_i32_0 = arith.constant 0 : i32
    return %arg0, %c0_i32 : i32, i32
  }
  func.func @transform_2(%arg0: i32) -> (i32, i32) {
    %c0_i32 = arith.constant 0 : i32
    %c0_i32_0 = arith.constant 0 : i32
    %c0_i32_1 = arith.constant 0 : i32
    return %c0_i32, %c0_i32_0 : i32, i32
  }
}

</mosaic_0001>

<llo_original>
// kernel: tpu_custom_call.1
$region0: #{tpu_custom_call.1}
  #allocation0 [shape = 'u32[]', space=smem, size = 0x4, offset = 0x4, fixed_abs, tag = 'smem constant byte address 0x4 - core index']
  #allocation1 [shape = 'u32[144,128]{1,0:T(1,128)}', space=vmem, size = 0x12000, scoped, tag = 'internal scratch']
  %s0 = inlined_call_operand.hbm [shape: f32[128,128], index: 0, kind: input, shape index: {}]
  %s1 = inlined_call_operand.hbm [shape: bf16[128,128], index: 1, kind: output, shape index: {0}]
  %s2 = inlined_call_operand.hbm [shape: f32[1,128], index: 2, kind: output, shape index: {1}]
  %3 = xla_tuple %s1, %s2
  %s4 = sld [smem:[#allocation0]]
  $region30: #{tpu_custom_call.1} parent=0
    _
  %s6 = ssub.s32 1, %s4
  %s7 = scalar_select 0, %s6, %s4
  $region1: #{tpu_custom_call.1} parent=0
    #allocation2 [shape = 'u8[65536]{0}', space=vmem, size = 0x10000, scoped, tag = 'input window, operand 0, single buffered']
    #allocation3 [shape = 's32[1]{0}', space=sflag, size = 0x4, scoped, tag = 'scoped memory for tpu_custom_call.1']
    #allocation4 [shape = 's32[1]{0}', space=sflag, size = 0x4, scoped, tag = 'scoped memory for tpu_custom_call.1']
    #allocation5 [shape = 'u8[32768]{0}', space=vmem, size = 0x8000, scoped, tag = 'output window, operand 0, single buffered']
    #allocation6 [shape = 'u8[512]{0}', space=vmem, size = 0x400, scoped, tag = 'output window, operand 1, single buffered']
    #allocation7 [shape = 's32[1]{0}', space=sflag, size = 0x4, scoped, tag = 'scoped memory for tpu_custom_call.1']
    %8 = vsyncpa [#allocation3], 0
    %9 = vsyncpa [#allocation4], 0
    %10 = vsyncpa [#allocation7], 0
    // Predicated region
    $region2: #{tpu_custom_call.1} parent=1 // pred_check
      _
    $region3: #{tpu_custom_call.1} parent=1 // pred_check_branch
      %12 = sbr.rel (0) target = $region5
    $region4: #{tpu_custom_call.1} parent=1 // pred_region
      %s14 = ssub.s32 2048, 2048
      %15 = vsyncadd [#allocation3], %s14
      %s16 = sshll.u32 [#allocation2], 4
      %s17 = int_to_ptr.vmem [resolvable:$true] %s16
      %22 = dma.hbm_to_vmem [thread:$0]  %s0, 2048, %s17, [#allocation3], 128, 128, 8
    $region5: #{tpu_custom_call.1} parent=1 // pred_fallthru
      _
    // Predicated region
    $region6: #{tpu_custom_call.1} parent=1 // pred_check
      _
    $region7: #{tpu_custom_call.1} parent=1 // pred_check_branch
      %24 = sbr.rel (0) target = $region9
    $region8: #{tpu_custom_call.1} parent=1 // pred_region
      %25 = dma.done [#allocation3], 2048
    $region9: #{tpu_custom_call.1} parent=1 // pred_fallthru
      _
    %v26 = vld [vmem:[#allocation2] sm:$0xff]
    %v27 = vld [vmem:[#allocation2 + $0x8] sm:$0xff]
    %v28 = vld [vmem:[#allocation2 + $0x10] sm:$0xff]
    %v29 = vld [vmem:[#allocation2 + $0x18] sm:$0xff]
    %v30 = vld [vmem:[#allocation2 + $0x20] sm:$0xff]
    %v31 = vld [vmem:[#allocation2 + $0x28] sm:$0xff]
    %v32 = vld [vmem:[#allocation2 + $0x30] sm:$0xff]
    %v33 = vld [vmem:[#allocation2 + $0x38] sm:$0xff]
    %v34 = vld [vmem:[#allocation2 + $0x40] sm:$0xff]
    %v35 = vld [vmem:[#allocation2 + $0x48] sm:$0xff]
    %v36 = vld [vmem:[#allocation2 + $0x50] sm:$0xff]
    %v37 = vld [vmem:[#allocation2 + $0x58] sm:$0xff]
    %v38 = vld [vmem:[#allocation2 + $0x60] sm:$0xff]
    %v39 = vld [vmem:[#allocation2 + $0x68] sm:$0xff]
    %v40 = vld [vmem:[#allocation2 + $0x70] sm:$0xff]
    %v41 = vld [vmem:[#allocation2 + $0x78] sm:$0xff]
    %vm42 = vcmp.gt.f32.partialorder %v26, 0.85
    %vm43 = vcmp.gt.f32.partialorder %v27, 0.85
    %vm44 = vcmp.gt.f32.partialorder %v28, 0.85
    %vm45 = vcmp.gt.f32.partialorder %v29, 0.85
    %vm46 = vcmp.gt.f32.partialorder %v30, 0.85
    %vm47 = vcmp.gt.f32.partialorder %v31, 0.85
    %vm48 = vcmp.gt.f32.partialorder %v32, 0.85
    %vm49 = vcmp.gt.f32.partialorder %v33, 0.85
    %vm50 = vcmp.gt.f32.partialorder %v34, 0.85
    %vm51 = vcmp.gt.f32.partialorder %v35, 0.85
    %vm52 = vcmp.gt.f32.partialorder %v36, 0.85
    %vm53 = vcmp.gt.f32.partialorder %v37, 0.85
    %vm54 = vcmp.gt.f32.partialorder %v38, 0.85
    %vm55 = vcmp.gt.f32.partialorder %v39, 0.85
    %vm56 = vcmp.gt.f32.partialorder %v40, 0.85
    %vm57 = vcmp.gt.f32.partialorder %v41, 0.85
    %v58 = vsel %vm42, 1, 0
    %v59 = vsel %vm43, 1, 0
    %v60 = vsel %vm44, 1, 0
    %v61 = vsel %vm45, 1, 0
    %v62 = vsel %vm46, 1, 0
    %v63 = vsel %vm47, 1, 0
    %v64 = vsel %vm48, 1, 0
    %v65 = vsel %vm49, 1, 0
    %v66 = vsel %vm50, 1, 0
    %v67 = vsel %vm51, 1, 0
    %v68 = vsel %vm52, 1, 0
    %v69 = vsel %vm53, 1, 0
    %v70 = vsel %vm54, 1, 0
    %v71 = vsel %vm55, 1, 0
    %v72 = vsel %vm56, 1, 0
    %v73 = vsel %vm57, 1, 0
    %v74 = vcvt.s32.f32 %v58
    %v75 = vcvt.s32.f32 %v59
    %v76 = vcvt.s32.f32 %v60
    %v77 = vcvt.s32.f32 %v61
    %v78 = vcvt.s32.f32 %v62
    %v79 = vcvt.s32.f32 %v63
    %v80 = vcvt.s32.f32 %v64
    %v81 = vcvt.s32.f32 %v65
    %v82 = vcvt.s32.f32 %v66
    %v83 = vcvt.s32.f32 %v67
    %v84 = vcvt.s32.f32 %v68
    %v85 = vcvt.s32.f32 %v69
    %v86 = vcvt.s32.f32 %v70
    %v87 = vcvt.s32.f32 %v71
    %v88 = vcvt.s32.f32 %v72
    %v89 = vcvt.s32.f32 %v73
    %90 = vadd.xlane.f32.xlu0 %v74
    %v91 = vpop.xlane.xlu0 %90
    %92 = vadd.xlane.f32.xlu0 %v75
    %v93 = vpop.xlane.xlu0 %92
    %94 = vadd.xlane.f32.xlu0 %v76
    %v95 = vpop.xlane.xlu0 %94
    %96 = vadd.xlane.f32.xlu0 %v77
    %v97 = vpop.xlane.xlu0 %96
    %98 = vadd.xlane.f32.xlu0 %v78
    %v99 = vpop.xlane.xlu0 %98
    %100 = vadd.xlane.f32.xlu0 %v79
    %v101 = vpop.xlane.xlu0 %100
    %102 = vadd.xlane.f32.xlu0 %v80
    %v103 = vpop.xlane.xlu0 %102
    %104 = vadd.xlane.f32.xlu0 %v81
    %v105 = vpop.xlane.xlu0 %104
    %106 = vadd.xlane.f32.xlu0 %v82
    %v107 = vpop.xlane.xlu0 %106
    %108 = vadd.xlane.f32.xlu0 %v83
    %v109 = vpop.xlane.xlu0 %108
    %110 = vadd.xlane.f32.xlu0 %v84
    %v111 = vpop.xlane.xlu0 %110
    %112 = vadd.xlane.f32.xlu0 %v85
    %v113 = vpop.xlane.xlu0 %112
    %114 = vadd.xlane.f32.xlu0 %v86
    %v115 = vpop.xlane.xlu0 %114
    %116 = vadd.xlane.f32.xlu0 %v87
    %v117 = vpop.xlane.xlu0 %116
    %118 = vadd.xlane.f32.xlu0 %v88
    %v119 = vpop.xlane.xlu0 %118
    %120 = vadd.xlane.f32.xlu0 %v89
    %v121 = vpop.xlane.xlu0 %120
    %vm122 = vcmp.lt.f32.partialorder %v91, 115.2
    %vm123 = vcmp.lt.f32.partialorder %v93, 115.2
    %vm124 = vcmp.lt.f32.partialorder %v95, 115.2
    %vm125 = vcmp.lt.f32.partialorder %v97, 115.2
    %vm126 = vcmp.lt.f32.partialorder %v99, 115.2
    %vm127 = vcmp.lt.f32.partialorder %v101, 115.2
    %vm128 = vcmp.lt.f32.partialorder %v103, 115.2
    %vm129 = vcmp.lt.f32.partialorder %v105, 115.2
    %vm130 = vcmp.lt.f32.partialorder %v107, 115.2
    %vm131 = vcmp.lt.f32.partialorder %v109, 115.2
    %vm132 = vcmp.lt.f32.partialorder %v111, 115.2
    %vm133 = vcmp.lt.f32.partialorder %v113, 115.2
    %vm134 = vcmp.lt.f32.partialorder %v115, 115.2
    %vm135 = vcmp.lt.f32.partialorder %v117, 115.2
    %vm136 = vcmp.lt.f32.partialorder %v119, 115.2
    %vm137 = vcmp.lt.f32.partialorder %v121, 115.2
    %v138 = vsel %vm122, 1, 0
    %v139 = vsel %vm123, 1, 0
    %v140 = vsel %vm124, 1, 0
    %v141 = vsel %vm125, 1, 0
    %v142 = vsel %vm126, 1, 0
    %v143 = vsel %vm127, 1, 0
    %v144 = vsel %vm128, 1, 0
    %v145 = vsel %vm129, 1, 0
    %v146 = vsel %vm130, 1, 0
    %v147 = vsel %vm131, 1, 0
    %v148 = vsel %vm132, 1, 0
    %v149 = vsel %vm133, 1, 0
    %v150 = vsel %vm134, 1, 0
    %v151 = vsel %vm135, 1, 0
    %v152 = vsel %vm136, 1, 0
    %v153 = vsel %vm137, 1, 0
    %v154 = vcvt.s32.f32 %v138
    %v155 = vcvt.s32.f32 %v139
    %v156 = vcvt.s32.f32 %v140
    %v157 = vcvt.s32.f32 %v141
    %v158 = vcvt.s32.f32 %v142
    %v159 = vcvt.s32.f32 %v143
    %v160 = vcvt.s32.f32 %v144
    %v161 = vcvt.s32.f32 %v145
    %v162 = vcvt.s32.f32 %v146
    %v163 = vcvt.s32.f32 %v147
    %v164 = vcvt.s32.f32 %v148
    %v165 = vcvt.s32.f32 %v149
    %v166 = vcvt.s32.f32 %v150
    %v167 = vcvt.s32.f32 %v151
    %v168 = vcvt.s32.f32 %v152
    %v169 = vcvt.s32.f32 %v153
    %v170 = vmul.f32 %v74, %v154
    %v171 = vmul.f32 %v75, %v155
    %v172 = vmul.f32 %v76, %v156
    %v173 = vmul.f32 %v77, %v157
    %v174 = vmul.f32 %v78, %v158
    %v175 = vmul.f32 %v79, %v159
    %v176 = vmul.f32 %v80, %v160
    %v177 = vmul.f32 %v81, %v161
    %v178 = vmul.f32 %v82, %v162
    %v179 = vmul.f32 %v83, %v163
    %v180 = vmul.f32 %v84, %v164
    %v181 = vmul.f32 %v85, %v165
    %v182 = vmul.f32 %v86, %v166
    %v183 = vmul.f32 %v87, %v167
    %v184 = vmul.f32 %v88, %v168
    %v185 = vmul.f32 %v89, %v169
    %s186 = smul.u32 0, 128
    %v187 = vlaneseq
    %v188 = vshrl.u32 %v187, 7
    %v189 = vadd.s32 %v188, 8
    %v190 = vadd.s32 %v188, 16
    %v191 = vadd.s32 %v188, 24
    %v192 = vadd.s32 %v188, 32
    %v193 = vadd.s32 %v188, 40
    %v194 = vadd.s32 %v188, 48
    %v195 = vadd.s32 %v188, 56
    %v196 = vadd.s32 %v188, 64
    %v197 = vadd.s32 %v188, 72
    %v198 = vadd.s32 %v188, 80
    %v199 = vadd.s32 %v188, 88
    %v200 = vadd.s32 %v188, 96
    %v201 = vadd.s32 %v188, 104
    %v202 = vadd.s32 %v188, 112
    %v203 = vadd.s32 %v188, 120
    %v204 = vstv %s186
    %v205 = vadd.s32 %v204, %v188
    %v206 = vadd.s32 %v204, %v189
    %v207 = vadd.s32 %v204, %v190
    %v208 = vadd.s32 %v204, %v191
    %v209 = vadd.s32 %v204, %v192
    %v210 = vadd.s32 %v204, %v193
    %v211 = vadd.s32 %v204, %v194
    %v212 = vadd.s32 %v204, %v195
    %v213 = vadd.s32 %v204, %v196
    %v214 = vadd.s32 %v204, %v197
    %v215 = vadd.s32 %v204, %v198
    %v216 = vadd.s32 %v204, %v199
    %v217 = vadd.s32 %v204, %v200
    %v218 = vadd.s32 %v204, %v201
    %v219 = vadd.s32 %v204, %v202
    %v220 = vadd.s32 %v204, %v203
    %vm221 = vcmp.lt.s32.totalorder %v205, 128
    %vm222 = vcmp.lt.s32.totalorder %v206, 128
    %vm223 = vcmp.lt.s32.totalorder %v207, 128
    %vm224 = vcmp.lt.s32.totalorder %v208, 128
    %vm225 = vcmp.lt.s32.totalorder %v209, 128
    %vm226 = vcmp.lt.s32.totalorder %v210, 128
    %vm227 = vcmp.lt.s32.totalorder %v211, 128
    %vm228 = vcmp.lt.s32.totalorder %v212, 128
    %vm229 = vcmp.lt.s32.totalorder %v213, 128
    %vm230 = vcmp.lt.s32.totalorder %v214, 128
    %vm231 = vcmp.lt.s32.totalorder %v215, 128
    %vm232 = vcmp.lt.s32.totalorder %v216, 128
    %vm233 = vcmp.lt.s32.totalorder %v217, 128
    %vm234 = vcmp.lt.s32.totalorder %v218, 128
    %vm235 = vcmp.lt.s32.totalorder %v219, 128
    %vm236 = vcmp.lt.s32.totalorder %v220, 128
    %v237 = vsel %vm221, %v170, 0.0
    %v238 = vsel %vm222, %v171, 0.0
    %v239 = vsel %vm223, %v172, 0.0
    %v240 = vsel %vm224, %v173, 0.0
    %v241 = vsel %vm225, %v174, 0.0
    %v242 = vsel %vm226, %v175, 0.0
    %v243 = vsel %vm227, %v176, 0.0
    %v244 = vsel %vm228, %v177, 0.0
    %v245 = vsel %vm229, %v178, 0.0
    %v246 = vsel %vm230, %v179, 0.0
    %v247 = vsel %vm231, %v180, 0.0
    %v248 = vsel %vm232, %v181, 0.0
    %v249 = vsel %vm233, %v182, 0.0
    %v250 = vsel %vm234, %v183, 0.0
    %v251 = vsel %vm235, %v184, 0.0
    %v252 = vsel %vm236, %v185, 0.0
    %v253 = vpack.c.bf16 %v238, %v237
    %v254 = vpack.c.bf16 %v240, %v239
    %v255 = vpack.c.bf16 %v242, %v241
    %v256 = vpack.c.bf16 %v244, %v243
    %v257 = vpack.c.bf16 %v246, %v245
    %v258 = vpack.c.bf16 %v248, %v247
    %v259 = vpack.c.bf16 %v250, %v249
    %v260 = vpack.c.bf16 %v252, %v251
    %v269 = vunpack.c.l.b16 %v253
    %v270 = vunpack.c.h.b16 %v253
    %v271 = vunpack.c.l.b16 %v254
    %v272 = vunpack.c.h.b16 %v254
    %v273 = vunpack.c.l.b16 %v255
    %v274 = vunpack.c.h.b16 %v255
    %v275 = vunpack.c.l.b16 %v256
    %v276 = vunpack.c.h.b16 %v256
    %v277 = vunpack.c.l.b16 %v257
    %v278 = vunpack.c.h.b16 %v257
    %v279 = vunpack.c.l.b16 %v258
    %v280 = vunpack.c.h.b16 %v258
    %v281 = vunpack.c.l.b16 %v259
    %v282 = vunpack.c.h.b16 %v259
    %v283 = vunpack.c.l.b16 %v260
    %v284 = vunpack.c.h.b16 %v260
    %v285 = vpack.c.b16 %v269, %v269
    %v286 = vpack.c.b16 %v270, %v270
    %v287 = vpack.c.b16 %v271, %v271
    %v288 = vpack.c.b16 %v272, %v272
    %v289 = vpack.c.b16 %v273, %v273
    %v290 = vpack.c.b16 %v274, %v274
    %v291 = vpack.c.b16 %v275, %v275
    %v292 = vpack.c.b16 %v276, %v276
    %v293 = vpack.c.b16 %v277, %v277
    %v294 = vpack.c.b16 %v278, %v278
    %v295 = vpack.c.b16 %v279, %v279
    %v296 = vpack.c.b16 %v280, %v280
    %v297 = vpack.c.b16 %v281, %v281
    %v298 = vpack.c.b16 %v282, %v282
    %v299 = vpack.c.b16 %v283, %v283
    %v300 = vpack.c.b16 %v284, %v284
    %317 = vst [vmem:[#allocation5] sm:$0xf] %v285
    %318 = vst [vmem:[#allocation5 + $0x4] sm:$0xf] %v286
    %319 = vst [vmem:[#allocation5 + $0x8] sm:$0xf] %v287
    %320 = vst [vmem:[#allocation5 + $0xc] sm:$0xf] %v288
    %321 = vst [vmem:[#allocation5 + $0x10] sm:$0xf] %v289
    %322 = vst [vmem:[#allocation5 + $0x14] sm:$0xf] %v290
    %323 = vst [vmem:[#allocation5 + $0x18] sm:$0xf] %v291
    %324 = vst [vmem:[#allocation5 + $0x1c] sm:$0xf] %v292
    %325 = vst [vmem:[#allocation5 + $0x20] sm:$0xf] %v293
    %326 = vst [vmem:[#allocation5 + $0x24] sm:$0xf] %v294
    %327 = vst [vmem:[#allocation5 + $0x28] sm:$0xf] %v295
    %328 = vst [vmem:[#allocation5 + $0x2c] sm:$0xf] %v296
    %329 = vst [vmem:[#allocation5 + $0x30] sm:$0xf] %v297
    %330 = vst [vmem:[#allocation5 + $0x34] sm:$0xf] %v298
    %331 = vst [vmem:[#allocation5 + $0x38] sm:$0xf] %v299
    %332 = vst [vmem:[#allocation5 + $0x3c] sm:$0xf] %v300
    %p333 = scmp.eq.s32.totalorder 0, 0
    // Predicated region
    $region10: #{tpu_custom_call.1} parent=1 // pred_check
      %p334 = pneg %p333
    $region11: #{tpu_custom_call.1} parent=1 // pred_check_branch
      %336 = sbr.rel (%p334) target = $region13
    $region12: #{tpu_custom_call.1} parent=1 // pred_region
      %337 = vst [vmem:[#allocation6] sm:$0x1] 0.0
    $region13: #{tpu_custom_call.1} parent=1 // pred_fallthru
      _
    %v338 = vld [vmem:[#allocation6] sm:$0x1]
    %v339 = vadd.f32 %v237, %v238
    %v340 = vadd.f32 %v339, %v239
    %v341 = vadd.f32 %v340, %v240
    %v342 = vadd.f32 %v341, %v241
    %v343 = vadd.f32 %v342, %v242
    %v344 = vadd.f32 %v343, %v243
    %v345 = vadd.f32 %v344, %v244
    %v346 = vadd.f32 %v345, %v245
    %v347 = vadd.f32 %v346, %v246
    %v348 = vadd.f32 %v347, %v247
    %v349 = vadd.f32 %v348, %v248
    %v350 = vadd.f32 %v349, %v249
    %v351 = vadd.f32 %v350, %v250
    %v352 = vadd.f32 %v351, %v251
    %v353 = vadd.f32 %v352, %v252
    %v354 = vrot.slane %v353, 4
    %v355 = vadd.f32 %v353, %v354
    %v356 = vrot.slane %v355, 2
    %v357 = vadd.f32 %v355, %v356
    %v358 = vrot.slane %v357, 1
    %v359 = vadd.f32 %v357, %v358
    %v360 = vadd.f32 %v338, %v359
    %361 = vst [vmem:[#allocation6] sm:$0x1] %v360
    // Predicated region
    $region14: #{tpu_custom_call.1} parent=1 // pred_check
      _
    $region15: #{tpu_custom_call.1} parent=1 // pred_check_branch
      %363 = sbr.rel (0) target = $region17
    $region16: #{tpu_custom_call.1} parent=1 // pred_region
      %s365 = ssub.s32 1024, 1024
      %366 = vsyncadd [#allocation4], %s365
      %s367 = sshll.u32 [#allocation5], 4
      %s368 = int_to_ptr.vmem [resolvable:$true] %s367
      %373 = dma.vmem_to_hbm [thread:$0]  %s368, 1024, %s1, [#allocation4], 64, 64, 4
    $region17: #{tpu_custom_call.1} parent=1 // pred_fallthru
      _
    // Predicated region
    $region18: #{tpu_custom_call.1} parent=1 // pred_check
      _
    $region19: #{tpu_custom_call.1} parent=1 // pred_check_branch
      %375 = sbr.rel (0) target = $region21
    $region20: #{tpu_custom_call.1} parent=1 // pred_region
      %s377 = ssub.s32 16, 16
      %378 = vsyncadd [#allocation7], %s377
      %s380 = sshll.u32 [#allocation6], 4
      %s381 = int_to_ptr.vmem [resolvable:$true] %s380
      %383 = dma.vmem_to_hbm [thread:$0]  %s381, 16, %s2, [#allocation7]
    $region21: #{tpu_custom_call.1} parent=1 // pred_fallthru
      _
    // Predicated region
    $region22: #{tpu_custom_call.1} parent=1 // pred_check
      _
    $region23: #{tpu_custom_call.1} parent=1 // pred_check_branch
      %385 = sbr.rel (0) target = $region25
    $region24: #{tpu_custom_call.1} parent=1 // pred_region
      %386 = dma.done [#allocation4], 1024
    $region25: #{tpu_custom_call.1} parent=1 // pred_fallthru
      _
    // Predicated region
    $region26: #{tpu_custom_call.1} parent=1 // pred_check
      _
    $region27: #{tpu_custom_call.1} parent=1 // pred_check_branch
      %388 = sbr.rel (0) target = $region29
    $region28: #{tpu_custom_call.1} parent=1 // pred_region
      %389 = dma.done [#allocation7], 16
    $region29: #{tpu_custom_call.1} parent=1 // pred_fallthru
      _
    %390 = vsyncpa [#allocation3], 1
    %391 = vsyncpa [#allocation4], 1
    %392 = vsyncpa [#allocation7], 1

</llo_original>
